<compile_context>
chip_gen: v5e
topology: v5e:2x2
jax: 0.10.0
libtpu: 0.0.40
codegen_flags: <defaults>
</compile_context>

<pallas_src>
import functools

import numpy as np
import jax
import jax.numpy as jnp
from jax.experimental import pallas as pl
from jax.experimental.pallas import tpu as pltpu


# ----------------------------------------------------------------------------
# Pallas kernel 1: tiled matmul, bf16 operands, f32 acc, fused bias + ReLU
# ----------------------------------------------------------------------------
def _mm_bias_relu_kernel(x_ref, w_ref, b_ref, o_ref, acc_ref, *, relu):
    k = pl.program_id(2)

    @pl.when(k == 0)
    def _():
        # Bias folded into the accumulator init; the bias tile index is
        # k-invariant so it is not re-fetched across the reduction.
        acc_ref[...] = jnp.broadcast_to(b_ref[...], acc_ref.shape)

    acc_ref[...] += jnp.dot(
        x_ref[...], w_ref[...], preferred_element_type=jnp.float32
    )

    @pl.when(k == pl.num_programs(2) - 1)
    def _():
        y = acc_ref[...]
        if relu:
            y = jnp.maximum(y, 0.0)
        o_ref[...] = y.astype(o_ref.dtype)


def _round_up(x, m):
    return (x + m - 1) // m * m


def matmul_bias_act(x, w, b, relu):
    """y = [relu](x @ w + b); x:(M,K) w:(K,N) b:(N,) -> (M,N) f32 (bf16 MXU ops)."""
    M, K = x.shape
    _, N = w.shape
    # Adaptive tiles: 256-wide M/N where the problem permits, deep K tiles
    # (full K when <= 2048) to amortize the per-grid-step overhead.
    tm = 256 if M > 128 else 128
    tn = 256 if N > 128 else 128
    k128 = _round_up(K, 128)
    tk = k128 if k128 <= 2048 else 1024
    Mp, Np, Kp = _round_up(M, tm), _round_up(N, tn), _round_up(K, tk)

    xp = jnp.pad(x.astype(jnp.bfloat16), ((0, Mp - M), (0, Kp - K)))
    wp = jnp.pad(w.astype(jnp.bfloat16), ((0, Kp - K), (0, Np - N)))
    bp = jnp.pad(b.astype(jnp.float32), ((0, Np - N),)).reshape(1, Np)

    grid = (Mp // tm, Np // tn, Kp // tk)
    out = pl.pallas_call(
        functools.partial(_mm_bias_relu_kernel, relu=relu),
        out_shape=jax.ShapeDtypeStruct((Mp, Np), jnp.float32),
        grid_spec=pltpu.PrefetchScalarGridSpec(
            num_scalar_prefetch=0,
            grid=grid,
            in_specs=[
                pl.BlockSpec((tm, tk), lambda i, j, k: (i, k)),
                pl.BlockSpec((tk, tn), lambda i, j, k: (k, j)),
                pl.BlockSpec((1, tn), lambda i, j, k: (0, j)),
            ],
            out_specs=pl.BlockSpec((tm, tn), lambda i, j, k: (i, j)),
            scratch_shapes=[pltpu.VMEM((tm, tn), jnp.float32)],
        ),
        compiler_params=pltpu.CompilerParams(
            dimension_semantics=("parallel", "parallel", "arbitrary"),
            vmem_limit_bytes=32 * 1024 * 1024,
        ),
    )(xp, wp, bp)
    return out[:M, :N]


# ----------------------------------------------------------------------------
# Pallas kernel 2: fused 1x1 conv (c4) + ReLU + 1x1 conv (c5) + ReLU + pool(P)
# ----------------------------------------------------------------------------
def _head_pool_kernel(x_ref, w4_ref, b4_ref, w5_ref, b5_ref, o_ref, acc_ref,
                      *, pool, P):
    p = pl.program_id(2)
    C, tm = x_ref.shape[2], x_ref.shape[3]
    xb = x_ref[...].reshape(C, tm)                         # (C, tm) bf16, lane-dense
    h = jnp.dot(w4_ref[...], xb, preferred_element_type=jnp.float32)
    h = jnp.maximum(h + b4_ref[...], 0.0)                  # (OC4, tm) f32
    y = jnp.sum(w5_ref[...] * h, axis=0, keepdims=True)    # (1, tm) f32 (VPU+XLU)
    y = jnp.maximum(y + b5_ref[...], 0.0)
    if pool == "mean":
        y = y * (1.0 / P)

    @pl.when(p == 0)
    def _():
        acc_ref[...] = y

    @pl.when(p > 0)
    def _():
        if pool == "mean":
            acc_ref[...] = acc_ref[...] + y
        else:
            acc_ref[...] = jnp.maximum(acc_ref[...], y)

    @pl.when(p == pl.num_programs(2) - 1)
    def _():
        o_ref[...] = acc_ref[...][None]


def fused_head_pool(x, w4, b4, w5, b5, pool):
    """x: (B, P, C, M) f32 channels-first flattened spatial -> (B, M) f32.

    Fuses the two 1x1 convs (C->OC4 + ReLU, OC4->1 + ReLU) with the max/mean
    pool over the P exemplars; output stores are lane-dense (512 lanes).
    """
    B, P, C, M = x.shape
    OC4 = w4.shape[0]
    tm = min(512, _round_up(M, 128))
    Mp = _round_up(M, tm)
    xp = jnp.pad(x, ((0, 0), (0, 0), (0, 0), (0, Mp - M))).astype(jnp.bfloat16)
    w4m = w4.reshape(OC4, C).astype(jnp.bfloat16)
    b4c = b4.reshape(OC4, 1).astype(jnp.float32)
    w5c = w5.reshape(1, OC4).T.astype(jnp.float32)         # (OC4, 1)
    b5c = b5.reshape(1, 1).astype(jnp.float32)

    grid = (B, Mp // tm, P)
    out = pl.pallas_call(
        functools.partial(_head_pool_kernel, pool=pool, P=P),
        out_shape=jax.ShapeDtypeStruct((B, 1, Mp), jnp.float32),
        grid_spec=pltpu.PrefetchScalarGridSpec(
            num_scalar_prefetch=0,
            grid=grid,
            in_specs=[
                pl.BlockSpec((1, 1, C, tm), lambda b, i, p: (b, p, 0, i)),
                pl.BlockSpec((OC4, C), lambda b, i, p: (0, 0)),
                pl.BlockSpec((OC4, 1), lambda b, i, p: (0, 0)),
                pl.BlockSpec((OC4, 1), lambda b, i, p: (0, 0)),
                pl.BlockSpec((1, 1), lambda b, i, p: (0, 0)),
            ],
            out_specs=pl.BlockSpec((1, 1, tm), lambda b, i, p: (b, 0, i)),
            scratch_shapes=[pltpu.VMEM((1, tm), jnp.float32)],
        ),
        compiler_params=pltpu.CompilerParams(
            dimension_semantics=("parallel", "parallel", "arbitrary"),
            vmem_limit_bytes=32 * 1024 * 1024,
        ),
    )(xp, w4m, b4c, w5c, b5c)
    return out[:, 0, :M]


# ----------------------------------------------------------------------------
# Conv2d = channels-last im2col (no transposes) + Pallas matmul
# ----------------------------------------------------------------------------
def conv2d_nhwc(x, w, b=None, stride=1, padding=(0, 0, 0, 0), relu=False,
                w_is_ohwi=False):
    """x:(N,H,W,C) channels-last; w: OIHW (OC,C,KH,KW) or OHWI (OC,KH,KW,C).

    padding = (top, bottom, left, right). Returns (N,OH,OW,OC) f32.
    """
    N, H, W, C = x.shape
    if w_is_ohwi:
        OC, KH, KW, _ = w.shape
        wmat = w.transpose(1, 2, 3, 0).reshape(KH * KW * C, OC)
    else:
        OC, _, KH, KW = w.shape
        wmat = w.transpose(2, 3, 1, 0).reshape(KH * KW * C, OC)
    pt, pb, pleft, pright = padding
    xp = jnp.pad(x, ((0, 0), (pt, pb), (pleft, pright), (0, 0)))
    Hp, Wp = H + pt + pb, W + pleft + pright
    OH = (Hp - KH) // stride + 1
    OW = (Wp - KW) // stride + 1

    if KH == 1 and KW == 1 and stride == 1:
        cols = xp.reshape(N * OH * OW, C)
    else:
        # TODO(synk): im2col is still materialized in HBM (KH*KW blow-up); a
        # fully in-kernel im2col (overlapping halo blocks via manual DMA) would
        # cut this bandwidth further.
        slices = []
        for i in range(KH):
            for j in range(KW):
                slices.append(
                    xp[:, i:i + stride * OH:stride, j:j + stride * OW:stride, :]
                )
        cols = jnp.concatenate(slices, axis=-1).reshape(N * OH * OW, KH * KW * C)

    if b is None:
        b = jnp.zeros((OC,), jnp.float32)
    y = matmul_bias_act(cols, wmat, b, relu=relu)
    return y.reshape(N, OH, OW, OC)


# ----------------------------------------------------------------------------
# Gather-free bilinear resize (interpolation matrices, PyTorch semantics)
# ----------------------------------------------------------------------------
def _interp_matrix(out_size, in_size, align_corners):
    m = np.zeros((out_size, in_size), np.float32)
    if in_size == 1:
        m[:, 0] = 1.0
        return m
    for d in range(out_size):
        if align_corners:
            src = d * (in_size - 1) / (out_size - 1) if out_size > 1 else 0.0
        else:
            src = (d + 0.5) * in_size / out_size - 0.5
            if src < 0.0:
                src = 0.0
        i0 = min(int(np.floor(src)), in_size - 1)
        i1 = min(i0 + 1, in_size - 1)
        w1 = src - i0
        m[d, i0] += 1.0 - w1
        m[d, i1] += w1
    return m


def resize_nhwc(x, out_h, out_w, align_corners=False):
    """Bilinear resize of (N,H,W,C) via dense contractions (no gathers)."""
    N, H, W, C = x.shape
    if out_h == H and out_w == W:
        return x
    uh = jnp.asarray(_interp_matrix(out_h, H, align_corners))
    uw = jnp.asarray(_interp_matrix(out_w, W, align_corners))
    x = jnp.einsum("ah,nhwc->nawc", uh, x.astype(jnp.float32))
    x = jnp.einsum("bw,nawc->nabc", uw, x)
    return x


# ----------------------------------------------------------------------------
# Parameters (deterministic synthetic init)
# ----------------------------------------------------------------------------
def init_params(key):
    ks = jax.random.split(key, 20)

    def conv_w(k, oc, ic, kh, kw):
        fan_in = ic * kh * kw
        return jax.random.normal(k, (oc, ic, kh, kw), jnp.float32) / np.sqrt(fan_in)

    def bias(k, oc):
        return jax.random.normal(k, (oc,), jnp.float32) * 0.01

    p = {}
    # TODO(synk): stand-in for pretrained Resnet50FPN (feat_map3 @ H/8, feat_map4 @ H/16)
    p["fe1_w"] = conv_w(ks[0], 8, 3, 8, 8)
    p["fe1_b"] = bias(ks[1], 8)
    p["fe2_w"] = conv_w(ks[2], 16, 8, 2, 2)
    p["fe2_b"] = bias(ks[3], 16)
    # CountRegressor(input_channels=6)
    p["c1_w"] = conv_w(ks[4], 196, 6, 7, 7)
    p["c1_b"] = bias(ks[5], 196)
    p["c2_w"] = conv_w(ks[6], 128, 196, 5, 5)
    p["c2_b"] = bias(ks[7], 128)
    p["c3_w"] = conv_w(ks[8], 64, 128, 3, 3)
    p["c3_b"] = bias(ks[9], 64)
    p["c4_w"] = conv_w(ks[10], 32, 64, 1, 1)
    p["c4_b"] = bias(ks[11], 32)
    p["c5_w"] = conv_w(ks[12], 1, 32, 1, 1)
    p["c5_b"] = bias(ks[13], 1)
    return p


# ----------------------------------------------------------------------------
# Famnet pieces (all channels-last)
# ----------------------------------------------------------------------------
def feature_extractor_forward(params, images_nhwc):
    # feat_map3 at H/8, feat_map4 at H/16
    f3 = conv2d_nhwc(images_nhwc, params["fe1_w"], params["fe1_b"], stride=8, relu=True)
    f4 = conv2d_nhwc(f3, params["fe2_w"], params["fe2_b"], stride=2, relu=True)
    return [f3, f4]


def extract_features_jax(image_features, tlbrs_np, H, W, exemplar_scales):
    B = image_features[0].shape[0]
    P = tlbrs_np.shape[1]
    batch_sims = []
    for bi in range(B):
        sims = []
        for feat in image_features:
            f = feat[bi:bi + 1]                       # (1, FH, FW, FC)
            _, FH, FW, FC = f.shape
            assert H / FH == W / FW
            scaling = H / FH
            tlbr = tlbrs_np[bi].astype(np.float64) / scaling
            top_ = np.maximum(np.floor(tlbr[:, 0]), 0)
            left_ = np.maximum(np.floor(tlbr[:, 1]), 0)
            bot_ = np.minimum(np.ceil(tlbr[:, 2]) + 1, FH)
            right_ = np.minimum(np.ceil(tlbr[:, 3]) + 1, FW)
            PH = int(np.max(bot_ - top_))
            PW = int(np.max(right_ - left_))

            patches = []
            for pidx in range(P):
                t, l = int(top_[pidx]), int(left_[pidx])
                b_, r = int(bot_[pidx]), int(right_[pidx])
                pf = f[:, t:b_, l:r, :]
                pf = resize_nhwc(pf, PH, PW, align_corners=False)
                patches.append(pf)
            patches = jnp.concatenate(patches, axis=0)   # (P, PH, PW, FC)

            for scale in exemplar_scales:
                PHs = int(np.ceil(PH * scale))
                PWs = int(np.ceil(PW * scale))
                if PHs < 1:
                    PHs = PH
                if PWs < 1:
                    PWs = PW
                p_scaled = resize_nhwc(patches, PHs, PWs, align_corners=False)
                pad_l, pad_r = PWs // 2, (PWs - 1) // 2
                pad_t, pad_b = PHs // 2, (PHs - 1) // 2
                # exemplar similarity = correlation of feature map with patch kernels
                sim = conv2d_nhwc(
                    f, p_scaled, None,
                    padding=(pad_t, pad_b, pad_l, pad_r), relu=False,
                    w_is_ohwi=True,
                )                                        # (1, FH, FW, P)
                sim = jnp.transpose(sim, (3, 1, 2, 0))   # (P, FH, FW, 1)
                sim = resize_nhwc(sim, FH, FW, align_corners=False)
                sims.append(sim)
        SH = max(s.shape[1] for s in sims)
        SW = max(s.shape[2] for s in sims)
        sims = [resize_nhwc(s, SH, SW, align_corners=False) for s in sims]
        sims = jnp.concatenate(sims, axis=-1)            # (P, SH, SW, S)
        batch_sims.append(sims)
    return jnp.stack(batch_sims, axis=0)                 # (B, P, SH, SW, S)


def count_regressor_forward(params, sims, pool="max"):
    """sims: (B, P, SH, SW, S) channels-last -> density maps (B, 1, 8*SH, 8*SW)."""
    B, P, SH, SW, S = sims.shape
    # Whole (B*P) stack in one pass: no per-sample Python loop / launches.
    x = sims.reshape(B * P, SH, SW, S)
    x = conv2d_nhwc(x, params["c1_w"], params["c1_b"], padding=(3, 3, 3, 3), relu=True)
    x = resize_nhwc(x, 2 * x.shape[1], 2 * x.shape[2], align_corners=True)
    x = conv2d_nhwc(x, params["c2_w"], params["c2_b"], padding=(2, 2, 2, 2), relu=True)
    x = resize_nhwc(x, 2 * x.shape[1], 2 * x.shape[2], align_corners=True)
    x = conv2d_nhwc(x, params["c3_w"], params["c3_b"], padding=(1, 1, 1, 1), relu=True)

    # Final 2x upsample fused with the channels-first relayout required by the
    # fused c4/c5/pool head (two dense contractions, no gathers).
    N3, H3, W3, C3 = x.shape
    Hf, Wf = 2 * H3, 2 * W3
    uh = jnp.asarray(_interp_matrix(Hf, H3, True))
    uw = jnp.asarray(_interp_matrix(Wf, W3, True))
    t = jnp.einsum("ah,nhwc->nawc", uh, x)
    xcf = jnp.einsum("bw,nawc->ncab", uw, t)             # (B*P, C3, Hf, Wf)
    xcf = xcf.reshape(B, P, C3, Hf * Wf)

    dens = fused_head_pool(xcf, params["c4_w"], params["c4_b"],
                           params["c5_w"], params["c5_b"], pool=pool)
    return dens.reshape(B, 1, Hf, Wf)


def famnet_forward(params, images, tlbrs_np, exemplar_scales=(1, 0.9, 1.1), pool="max"):
    B, C, H, W = images.shape
    x = jnp.transpose(images, (0, 2, 3, 1))              # NCHW -> NHWC once
    feats = feature_extractor_forward(params, x)
    sims = extract_features_jax(feats, tlbrs_np, H, W, list(exemplar_scales))
    assert sims.shape[-1] == len(exemplar_scales) * len(feats)  # S == 6
    return count_regressor_forward(params, sims, pool=pool)


# ----------------------------------------------------------------------------
if __name__ == "__main__":
    key = jax.random.PRNGKey(0)
    pkey, ikey = jax.random.split(key)
    params = init_params(pkey)

    B, C, H, W, P = 2, 3, 64, 64, 2
    images = jax.random.normal(ikey, (B, C, H, W), jnp.float32)
    # exemplar boxes (t, l, b, r) in image coordinates; concrete (host-side)
    # values, matching the .item()/int() data-dependent slicing of the
    # PyTorch reference.
    tlbrs = np.array(
        [[[8.0, 8.0, 24.0, 28.0], [32.0, 16.0, 48.0, 40.0]],
         [[4.0, 4.0, 20.0, 20.0], [40.0, 40.0, 56.0, 60.0]]],
        dtype=np.float32,
    )

    out = famnet_forward(params, images, tlbrs)
    out = jax.block_until_ready(out)

    expected_shape = (B, 1, H, W)  # density map at 8x the H/8 feature resolution
    assert out.shape == expected_shape, out.shape
    assert bool(jnp.all(jnp.isfinite(out)))
    print("KERNEL_OK")
</pallas_src>

<mosaic_0001>
module attributes {stable_mosaic.version = 11 : i64} {
  func.func @_mm_bias_relu_kernel(%arg0: i32, %arg1: i32, %arg2: i32, %arg3: memref<128x256xbf16, #tpu.memory_space<vmem>>, %arg4: memref<256x128xbf16, #tpu.memory_space<vmem>>, %arg5: memref<1x128xf32, #tpu.memory_space<vmem>>, %arg6: memref<128x128xf32, #tpu.memory_space<vmem>>, %arg7: memref<128x128xf32, #tpu.memory_space<vmem>>) attributes {dimension_semantics = [#tpu.dimension_semantics<parallel>, #tpu.dimension_semantics<parallel>, #tpu.dimension_semantics<arbitrary>], iteration_bounds = array<i64: 1, 1, 1>, scalar_prefetch = 0 : i64, scratch_operands = 1 : i64, tpu.core_type = #tpu.core_type<tc>, window_params = [{transform_indices = @transform_0, window_bounds = array<i64: 128, 256>}, {transform_indices = @transform_1, window_bounds = array<i64: 256, 128>}, {transform_indices = @transform_2, window_bounds = array<i64: 1, 128>}, {transform_indices = @transform_3, window_bounds = array<i64: 128, 128>}]} {
    %c0_i32 = arith.constant 0 : i32
    %0 = arith.cmpi eq, %arg2, %c0_i32 : i32
    %1 = arith.extui %0 : i1 to i32
    %c0_i32_0 = arith.constant 0 : i32
    %2 = arith.cmpi ne, %1, %c0_i32_0 : i32
    scf.if %2 {
      %c0_10 = arith.constant 0 : index
      %c0_11 = arith.constant 0 : index
      %12 = vector.load %arg5[%c0_10, %c0_11] : memref<1x128xf32, #tpu.memory_space<vmem>>, vector<1x128xf32>
      %13 = vector.shape_cast %12 : vector<1x128xf32> to vector<1x128xf32>
      %14 = vector.broadcast %13 : vector<1x128xf32> to vector<128x128xf32>
      %c0_12 = arith.constant 0 : index
      %c0_13 = arith.constant 0 : index
      %15 = vector.load %arg7[%c0_12, %c0_13] : memref<128x128xf32, #tpu.memory_space<vmem>>, vector<128x128xf32>
      tpu.vector_store %arg7[%c0_12, %c0_13], %14 {strides = array<i32>} : memref<128x128xf32, #tpu.memory_space<vmem>>, vector<128x128xf32>,
    } else {
    }
    %c0 = arith.constant 0 : index
    %c0_1 = arith.constant 0 : index
    %3 = vector.load %arg7[%c0, %c0_1] : memref<128x128xf32, #tpu.memory_space<vmem>>, vector<128x128xf32>
    %c0_2 = arith.constant 0 : index
    %c0_3 = arith.constant 0 : index
    %4 = vector.load %arg3[%c0_2, %c0_3] : memref<128x256xbf16, #tpu.memory_space<vmem>>, vector<128x256xbf16>
    %c0_4 = arith.constant 0 : index
    %c0_5 = arith.constant 0 : index
    %5 = vector.load %arg4[%c0_4, %c0_5] : memref<256x128xbf16, #tpu.memory_space<vmem>>, vector<256x128xbf16>
    %cst = arith.constant dense<0.000000e+00> : vector<128x128xf32>
    %6 = tpu.matmul %4, %5, %cst {dimension_numbers = #tpu.dot_dimension_numbers<[1], [0], [0], [1], [0, 0, 1, 1], [], []>} : vector<128x256xbf16>, vector<256x128xbf16>, vector<128x128xf32> -> vector<128x128xf32>
    %7 = arith.addf %3, %6 : vector<128x128xf32>
    %c0_6 = arith.constant 0 : index
    %c0_7 = arith.constant 0 : index
    %8 = vector.load %arg7[%c0_6, %c0_7] : memref<128x128xf32, #tpu.memory_space<vmem>>, vector<128x128xf32>
    tpu.vector_store %arg7[%c0_6, %c0_7], %7 {strides = array<i32>} : memref<128x128xf32, #tpu.memory_space<vmem>>, vector<128x128xf32>,
    %c0_i32_8 = arith.constant 0 : i32
    %9 = arith.cmpi eq, %arg2, %c0_i32_8 : i32
    %10 = arith.extui %9 : i1 to i32
    %c0_i32_9 = arith.constant 0 : i32
    %11 = arith.cmpi ne, %10, %c0_i32_9 : i32
    scf.if %11 {
      %c0_10 = arith.constant 0 : index
      %c0_11 = arith.constant 0 : index
      %12 = vector.load %arg7[%c0_10, %c0_11] : memref<128x128xf32, #tpu.memory_space<vmem>>, vector<128x128xf32>
      %cst_12 = arith.constant 0.000000e+00 : f32
      %13 = vector.broadcast %cst_12 : f32 to vector<128x128xf32>
      %14 = arith.maximumf %12, %13 : vector<128x128xf32>
      %c0_13 = arith.constant 0 : index
      %c0_14 = arith.constant 0 : index
      %15 = vector.load %arg6[%c0_13, %c0_14] : memref<128x128xf32, #tpu.memory_space<vmem>>, vector<128x128xf32>
      tpu.vector_store %arg6[%c0_13, %c0_14], %14 {strides = array<i32>} : memref<128x128xf32, #tpu.memory_space<vmem>>, vector<128x128xf32>,
    } else {
    }
    return
  }
  func.func @transform_0(%arg0: i32, %arg1: i32, %arg2: i32) -> (i32, i32) {
    %c0_i32 = arith.constant 0 : i32
    return %arg0, %arg2 : i32, i32
  }
  func.func @transform_1(%arg0: i32, %arg1: i32, %arg2: i32) -> (i32, i32) {
    %c0_i32 = arith.constant 0 : i32
    return %arg2, %arg1 : i32, i32
  }
  func.func @transform_2(%arg0: i32, %arg1: i32, %arg2: i32) -> (i32, i32) {
    %c0_i32 = arith.constant 0 : i32
    %c0_i32_0 = arith.constant 0 : i32
    return %c0_i32, %arg1 : i32, i32
  }
  func.func @transform_3(%arg0: i32, %arg1: i32, %arg2: i32) -> (i32, i32) {
    %c0_i32 = arith.constant 0 : i32
    return %arg0, %arg1 : i32, i32
  }
}

</mosaic_0001>

<llo_original>
// kernel: tpu_custom_call.1
$region0: #{tpu_custom_call.1}
  #allocation0 [shape = 'u32[]', space=smem, size = 0x4, offset = 0x4, fixed_abs, tag = 'smem constant byte address 0x4 - core index']
  #allocation1 [shape = 'u32[72,128]{1,0:T(1,128)}', space=vmem, size = 0x9000, scoped, tag = 'internal scratch']
  #allocation2 [shape = 'f32[128,128]{1,0:T(8,128)}', space=vmem, size = 0x10000, scoped, tag = 'scratch operand']
  %s0 = inlined_call_operand.hbm [shape: bf16[128,256], index: 0, kind: input, shape index: {}]
  %s1 = inlined_call_operand.hbm [shape: bf16[256,128], index: 1, kind: input, shape index: {}]
  %s2 = inlined_call_operand.vmem [shape: f32[1,128], index: 2, kind: input, shape index: {}]
  %s3 = inlined_call_operand.hbm [shape: f32[128,128], index: 3, kind: output, shape index: {}]
  %s4 = sld [smem:[#allocation0]]
  $region38: #{tpu_custom_call.1} parent=0
    _
  %s6 = ssub.s32 1, %s4
  %s7 = scalar_select 0, %s6, %s4
  $region1: #{tpu_custom_call.1} parent=0
    #allocation3 [shape = 'u8[65536]{0}', space=vmem, size = 0x10000, scoped, tag = 'input window, operand 0, single buffered']
    #allocation4 [shape = 's32[1]{0}', space=sflag, size = 0x4, scoped, tag = 'scoped memory for tpu_custom_call.1']
    #allocation5 [shape = 's32[1]{0}', space=sflag, size = 0x4, scoped, tag = 'scoped memory for tpu_custom_call.1']
    #allocation6 [shape = 'u8[65536]{0}', space=vmem, size = 0x10000, scoped, tag = 'input window, operand 1, single buffered']
    #allocation7 [shape = 's32[1]{0}', space=sflag, size = 0x4, scoped, tag = 'scoped memory for tpu_custom_call.1']
    #allocation8 [shape = 'u8[65536]{0}', space=vmem, size = 0x10000, scoped, tag = 'output window, operand 0, single buffered']
    %8 = vsyncpa [#allocation4], 0
    %9 = vsyncpa [#allocation7], 0
    %10 = vsyncpa [#allocation5], 0
    // Predicated region
    $region2: #{tpu_custom_call.1} parent=1 // pred_check
      _
    $region3: #{tpu_custom_call.1} parent=1 // pred_check_branch
      %12 = sbr.rel (0) target = $region5
    $region4: #{tpu_custom_call.1} parent=1 // pred_region
      %14 = vsyncadd [#allocation4], 0
      %s15 = sshll.u32 %s0, 4
      %s16 = int_to_ptr.hbm [resolvable:$true] %s15
      %s17 = sshll.u32 [#allocation3], 4
      %s18 = int_to_ptr.vmem [resolvable:$true] %s17
      %23 = dma.hbm_to_vmem [thread:$0]  %s16, 2048, %s18, [#allocation4], 128, 128, 8
    $region5: #{tpu_custom_call.1} parent=1 // pred_fallthru
      _
    // Predicated region
    $region6: #{tpu_custom_call.1} parent=1 // pred_check
      _
    $region7: #{tpu_custom_call.1} parent=1 // pred_check_branch
      %25 = sbr.rel (0) target = $region9
    $region8: #{tpu_custom_call.1} parent=1 // pred_region
      %27 = vsyncadd [#allocation7], 0
      %s28 = sshll.u32 %s1, 4
      %s29 = int_to_ptr.hbm [resolvable:$true] %s28
      %s30 = sshll.u32 [#allocation6], 4
      %s31 = int_to_ptr.vmem [resolvable:$true] %s30
      %36 = dma.hbm_to_vmem [thread:$0]  %s29, 2048, %s31, [#allocation7], 64, 64, 4
    $region9: #{tpu_custom_call.1} parent=1 // pred_fallthru
      _
    // Predicated region
    $region10: #{tpu_custom_call.1} parent=1 // pred_check
      _
    $region11: #{tpu_custom_call.1} parent=1 // pred_check_branch
      %38 = sbr.rel (0) target = $region13
    $region12: #{tpu_custom_call.1} parent=1 // pred_region
      _
    $region13: #{tpu_custom_call.1} parent=1 // pred_fallthru
      _
    // Predicated region
    $region14: #{tpu_custom_call.1} parent=1 // pred_check
      _
    $region15: #{tpu_custom_call.1} parent=1 // pred_check_branch
      %40 = sbr.rel (0) target = $region17
    $region16: #{tpu_custom_call.1} parent=1 // pred_region
      %42 = dma.done [#allocation4], 2048
    $region17: #{tpu_custom_call.1} parent=1 // pred_fallthru
      _
    // Predicated region
    $region18: #{tpu_custom_call.1} parent=1 // pred_check
      _
    $region19: #{tpu_custom_call.1} parent=1 // pred_check_branch
      %44 = sbr.rel (0) target = $region21
    $region20: #{tpu_custom_call.1} parent=1 // pred_region
      %46 = dma.done [#allocation7], 2048
    $region21: #{tpu_custom_call.1} parent=1 // pred_fallthru
      _
    %p47 = scmp.eq.s32.totalorder 0, 0
    // Predicated region
    $region22: #{tpu_custom_call.1} parent=1 // pred_check
      %p48 = pneg %p47
    $region23: #{tpu_custom_call.1} parent=1 // pred_check_branch
      %50 = sbr.rel (%p48) target = $region25
    $region24: #{tpu_custom_call.1} parent=1 // pred_region
      %v51 = vld [vmem:[%s2] sm:$0x1]
      %v53 = vperm.slane %v51, 0
      %55 = vst [vmem:[#allocation2] sm:$0xff] %v53
      %56 = vst [vmem:[#allocation2 + $0x8] sm:$0xff] %v53
      %57 = vst [vmem:[#allocation2 + $0x10] sm:$0xff] %v53
      %58 = vst [vmem:[#allocation2 + $0x18] sm:$0xff] %v53
      %59 = vst [vmem:[#allocation2 + $0x20] sm:$0xff] %v53
      %60 = vst [vmem:[#allocation2 + $0x28] sm:$0xff] %v53
      %61 = vst [vmem:[#allocation2 + $0x30] sm:$0xff] %v53
      %62 = vst [vmem:[#allocation2 + $0x38] sm:$0xff] %v53
      %63 = vst [vmem:[#allocation2 + $0x40] sm:$0xff] %v53
      %64 = vst [vmem:[#allocation2 + $0x48] sm:$0xff] %v53
      %65 = vst [vmem:[#allocation2 + $0x50] sm:$0xff] %v53
      %66 = vst [vmem:[#allocation2 + $0x58] sm:$0xff] %v53
      %67 = vst [vmem:[#allocation2 + $0x60] sm:$0xff] %v53
      %68 = vst [vmem:[#allocation2 + $0x68] sm:$0xff] %v53
      %69 = vst [vmem:[#allocation2 + $0x70] sm:$0xff] %v53
      %70 = vst [vmem:[#allocation2 + $0x78] sm:$0xff] %v53
    $region25: #{tpu_custom_call.1} parent=1 // pred_fallthru
      _
    %v71 = vld [vmem:[#allocation2] sm:$0xff]
    %v72 = vld [vmem:[#allocation2 + $0x8] sm:$0xff]
    %v73 = vld [vmem:[#allocation2 + $0x10] sm:$0xff]
    %v74 = vld [vmem:[#allocation2 + $0x18] sm:$0xff]
    %v75 = vld [vmem:[#allocation2 + $0x20] sm:$0xff]
    %v76 = vld [vmem:[#allocation2 + $0x28] sm:$0xff]
    %v77 = vld [vmem:[#allocation2 + $0x30] sm:$0xff]
    %v78 = vld [vmem:[#allocation2 + $0x38] sm:$0xff]
    %v79 = vld [vmem:[#allocation2 + $0x40] sm:$0xff]
    %v80 = vld [vmem:[#allocation2 + $0x48] sm:$0xff]
    %v81 = vld [vmem:[#allocation2 + $0x50] sm:$0xff]
    %v82 = vld [vmem:[#allocation2 + $0x58] sm:$0xff]
    %v83 = vld [vmem:[#allocation2 + $0x60] sm:$0xff]
    %v84 = vld [vmem:[#allocation2 + $0x68] sm:$0xff]
    %v85 = vld [vmem:[#allocation2 + $0x70] sm:$0xff]
    %v86 = vld [vmem:[#allocation2 + $0x78] sm:$0xff]
    %v87 = vld [vmem:[#allocation3] sm:$0xff]
    %v88 = vld [vmem:[#allocation3 + $0x8] sm:$0xff]
    %v89 = vld [vmem:[#allocation3 + $0x10] sm:$0xff]
    %v90 = vld [vmem:[#allocation3 + $0x18] sm:$0xff]
    %v91 = vld [vmem:[#allocation3 + $0x20] sm:$0xff]
    %v92 = vld [vmem:[#allocation3 + $0x28] sm:$0xff]
    %v93 = vld [vmem:[#allocation3 + $0x30] sm:$0xff]
    %v94 = vld [vmem:[#allocation3 + $0x38] sm:$0xff]
    %v95 = vld [vmem:[#allocation3 + $0x40] sm:$0xff]
    %v96 = vld [vmem:[#allocation3 + $0x48] sm:$0xff]
    %v97 = vld [vmem:[#allocation3 + $0x50] sm:$0xff]
    %v98 = vld [vmem:[#allocation3 + $0x58] sm:$0xff]
    %v99 = vld [vmem:[#allocation3 + $0x60] sm:$0xff]
    %v100 = vld [vmem:[#allocation3 + $0x68] sm:$0xff]
    %v101 = vld [vmem:[#allocation3 + $0x70] sm:$0xff]
    %v102 = vld [vmem:[#allocation3 + $0x78] sm:$0xff]
    %v103 = vld [vmem:[#allocation6] sm:$0xf]
    %v104 = vld [vmem:[#allocation6 + $0x4] sm:$0xf]
    %v105 = vld [vmem:[#allocation6 + $0x8] sm:$0xf]
    %v106 = vld [vmem:[#allocation6 + $0xc] sm:$0xf]
    %v107 = vld [vmem:[#allocation6 + $0x10] sm:$0xf]
    %v108 = vld [vmem:[#allocation6 + $0x14] sm:$0xf]
    %v109 = vld [vmem:[#allocation6 + $0x18] sm:$0xf]
    %v110 = vld [vmem:[#allocation6 + $0x1c] sm:$0xf]
    %v111 = vld [vmem:[#allocation6 + $0x20] sm:$0xf]
    %v112 = vld [vmem:[#allocation6 + $0x24] sm:$0xf]
    %v113 = vld [vmem:[#allocation6 + $0x28] sm:$0xf]
    %v114 = vld [vmem:[#allocation6 + $0x2c] sm:$0xf]
    %v115 = vld [vmem:[#allocation6 + $0x30] sm:$0xf]
    %v116 = vld [vmem:[#allocation6 + $0x34] sm:$0xf]
    %v117 = vld [vmem:[#allocation6 + $0x38] sm:$0xf]
    %v118 = vld [vmem:[#allocation6 + $0x3c] sm:$0xf]
    %v119 = vld [vmem:[#allocation6 + $0x40] sm:$0xf]
    %v120 = vld [vmem:[#allocation6 + $0x44] sm:$0xf]
    %v121 = vld [vmem:[#allocation6 + $0x48] sm:$0xf]
    %v122 = vld [vmem:[#allocation6 + $0x4c] sm:$0xf]
    %v123 = vld [vmem:[#allocation6 + $0x50] sm:$0xf]
    %v124 = vld [vmem:[#allocation6 + $0x54] sm:$0xf]
    %v125 = vld [vmem:[#allocation6 + $0x58] sm:$0xf]
    %v126 = vld [vmem:[#allocation6 + $0x5c] sm:$0xf]
    %v127 = vld [vmem:[#allocation6 + $0x60] sm:$0xf]
    %v128 = vld [vmem:[#allocation6 + $0x64] sm:$0xf]
    %v129 = vld [vmem:[#allocation6 + $0x68] sm:$0xf]
    %v130 = vld [vmem:[#allocation6 + $0x6c] sm:$0xf]
    %v131 = vld [vmem:[#allocation6 + $0x70] sm:$0xf]
    %v132 = vld [vmem:[#allocation6 + $0x74] sm:$0xf]
    %v133 = vld [vmem:[#allocation6 + $0x78] sm:$0xf]
    %v134 = vld [vmem:[#allocation6 + $0x7c] sm:$0xf]
    %v151 = vunpack.c.l.b16 %v87
    %v152 = vunpack.c.h.b16 %v87
    %v153 = vunpack.c.l.b16 %v88
    %v154 = vunpack.c.h.b16 %v88
    %v155 = vunpack.c.l.b16 %v89
    %v156 = vunpack.c.h.b16 %v89
    %v157 = vunpack.c.l.b16 %v90
    %v158 = vunpack.c.h.b16 %v90
    %v159 = vunpack.c.l.b16 %v91
    %v160 = vunpack.c.h.b16 %v91
    %v161 = vunpack.c.l.b16 %v92
    %v162 = vunpack.c.h.b16 %v92
    %v163 = vunpack.c.l.b16 %v93
    %v164 = vunpack.c.h.b16 %v93
    %v165 = vunpack.c.l.b16 %v94
    %v166 = vunpack.c.h.b16 %v94
    %v167 = vunpack.c.l.b16 %v95
    %v168 = vunpack.c.h.b16 %v95
    %v169 = vunpack.c.l.b16 %v96
    %v170 = vunpack.c.h.b16 %v96
    %v171 = vunpack.c.l.b16 %v97
    %v172 = vunpack.c.h.b16 %v97
    %v173 = vunpack.c.l.b16 %v98
    %v174 = vunpack.c.h.b16 %v98
    %v175 = vunpack.c.l.b16 %v99
    %v176 = vunpack.c.h.b16 %v99
    %v177 = vunpack.c.l.b16 %v100
    %v178 = vunpack.c.h.b16 %v100
    %v179 = vunpack.c.l.b16 %v101
    %v180 = vunpack.c.h.b16 %v101
    %v181 = vunpack.c.l.b16 %v102
    %v182 = vunpack.c.h.b16 %v102
    %v183 = vpack.c.b16 %v153, %v151
    %v184 = vpack.c.b16 %v154, %v152
    %v185 = vpack.c.b16 %v157, %v155
    %v186 = vpack.c.b16 %v158, %v156
    %v187 = vpack.c.b16 %v161, %v159
    %v188 = vpack.c.b16 %v162, %v160
    %v189 = vpack.c.b16 %v165, %v163
    %v190 = vpack.c.b16 %v166, %v164
    %v191 = vpack.c.b16 %v169, %v167
    %v192 = vpack.c.b16 %v170, %v168
    %v193 = vpack.c.b16 %v173, %v171
    %v194 = vpack.c.b16 %v174, %v172
    %v195 = vpack.c.b16 %v177, %v175
    %v196 = vpack.c.b16 %v178, %v176
    %v197 = vpack.c.b16 %v181, %v179
    %v198 = vpack.c.b16 %v182, %v180
    %v247 = vunpack.c.l.b16 %v103
    %v248 = vunpack.c.l.b16 %v104
    %v249 = vunpack.c.l.b16 %v105
    %v250 = vunpack.c.l.b16 %v106
    %v251 = vunpack.c.l.b16 %v107
    %v252 = vunpack.c.l.b16 %v108
    %v253 = vunpack.c.l.b16 %v109
    %v254 = vunpack.c.l.b16 %v110
    %v255 = vunpack.c.l.b16 %v111
    %v256 = vunpack.c.l.b16 %v112
    %v257 = vunpack.c.l.b16 %v113
    %v258 = vunpack.c.l.b16 %v114
    %v259 = vunpack.c.l.b16 %v115
    %v260 = vunpack.c.l.b16 %v116
    %v261 = vunpack.c.l.b16 %v117
    %v262 = vunpack.c.l.b16 %v118
    %v263 = vunpack.c.l.b16 %v119
    %v264 = vunpack.c.l.b16 %v120
    %v265 = vunpack.c.l.b16 %v121
    %v266 = vunpack.c.l.b16 %v122
    %v267 = vunpack.c.l.b16 %v123
    %v268 = vunpack.c.l.b16 %v124
    %v269 = vunpack.c.l.b16 %v125
    %v270 = vunpack.c.l.b16 %v126
    %v271 = vunpack.c.l.b16 %v127
    %v272 = vunpack.c.l.b16 %v128
    %v273 = vunpack.c.l.b16 %v129
    %v274 = vunpack.c.l.b16 %v130
    %v275 = vunpack.c.l.b16 %v131
    %v276 = vunpack.c.l.b16 %v132
    %v277 = vunpack.c.l.b16 %v133
    %v278 = vunpack.c.l.b16 %v134
    %v279 = vpack.c.b16 %v248, %v247
    %v280 = vpack.c.b16 %v250, %v249
    %v281 = vpack.c.b16 %v252, %v251
    %v282 = vpack.c.b16 %v254, %v253
    %v283 = vpack.c.b16 %v256, %v255
    %v284 = vpack.c.b16 %v258, %v257
    %v285 = vpack.c.b16 %v260, %v259
    %v286 = vpack.c.b16 %v262, %v261
    %v287 = vpack.c.b16 %v264, %v263
    %v288 = vpack.c.b16 %v266, %v265
    %v289 = vpack.c.b16 %v268, %v267
    %v290 = vpack.c.b16 %v270, %v269
    %v291 = vpack.c.b16 %v272, %v271
    %v292 = vpack.c.b16 %v274, %v273
    %v293 = vpack.c.b16 %v276, %v275
    %v294 = vpack.c.b16 %v278, %v277
    %311 = vmatpush.bf16.msra.mxu0 %v286
    %312 = vmatpush.bf16.msra.mxu0 %v285
    %313 = vmatpush.bf16.msra.mxu0 %v284
    %314 = vmatpush.bf16.msra.mxu0 %v283
    %315 = vmatpush.bf16.msra.mxu0 %v282
    %316 = vmatpush.bf16.msra.mxu0 %v281
    %317 = vmatpush.bf16.msra.mxu0 %v280
    %318 = vmatpush.bf16.msra.mxu0 %v279
    %319 = vmatmul.bf16.gmra.mxu0 %v183
    %v320 = vpop.f32.mrf.mxu0
    %v321 = vadd.f32 0.0, %v320
    %v322 = vpop.f32.mrf.mxu0
    %v323 = vadd.f32 0.0, %v322
    %324 = vmatmul.bf16.gmra.mxu0 %v185
    %v325 = vpop.f32.mrf.mxu0
    %v326 = vadd.f32 0.0, %v325
    %v327 = vpop.f32.mrf.mxu0
    %v328 = vadd.f32 0.0, %v327
    %329 = vmatmul.bf16.gmra.mxu0 %v187
    %v330 = vpop.f32.mrf.mxu0
    %v331 = vadd.f32 0.0, %v330
    %v332 = vpop.f32.mrf.mxu0
    %v333 = vadd.f32 0.0, %v332
    %334 = vmatmul.bf16.gmra.mxu0 %v189
    %v335 = vpop.f32.mrf.mxu0
    %v336 = vadd.f32 0.0, %v335
    %v337 = vpop.f32.mrf.mxu0
    %v338 = vadd.f32 0.0, %v337
    %339 = vmatmul.bf16.gmra.mxu0 %v191
    %v340 = vpop.f32.mrf.mxu0
    %v341 = vadd.f32 0.0, %v340
    %v342 = vpop.f32.mrf.mxu0
    %v343 = vadd.f32 0.0, %v342
    %344 = vmatmul.bf16.gmra.mxu0 %v193
    %v345 = vpop.f32.mrf.mxu0
    %v346 = vadd.f32 0.0, %v345
    %v347 = vpop.f32.mrf.mxu0
    %v348 = vadd.f32 0.0, %v347
    %349 = vmatmul.bf16.gmra.mxu0 %v195
    %v350 = vpop.f32.mrf.mxu0
    %v351 = vadd.f32 0.0, %v350
    %v352 = vpop.f32.mrf.mxu0
    %v353 = vadd.f32 0.0, %v352
    %354 = vmatmul.bf16.gmra.mxu0 %v197
    %v355 = vpop.f32.mrf.mxu0
    %v356 = vadd.f32 0.0, %v355
    %v357 = vpop.f32.mrf.mxu0
    %v358 = vadd.f32 0.0, %v357
    %359 = vdwg.mxu0
    %360 = vmatpush.bf16.msra.mxu0 %v294
    %361 = vmatpush.bf16.msra.mxu0 %v293
    %362 = vmatpush.bf16.msra.mxu0 %v292
    %363 = vmatpush.bf16.msra.mxu0 %v291
    %364 = vmatpush.bf16.msra.mxu0 %v290
    %365 = vmatpush.bf16.msra.mxu0 %v289
    %366 = vmatpush.bf16.msra.mxu0 %v288
    %367 = vmatpush.bf16.msra.mxu0 %v287
    %368 = vmatmul.bf16.gmra.mxu0 %v184
    %v369 = vpop.f32.mrf.mxu0
    %v370 = vadd.f32 %v321, %v369
    %v371 = vpop.f32.mrf.mxu0
    %v372 = vadd.f32 %v323, %v371
    %373 = vmatmul.bf16.gmra.mxu0 %v186
    %v374 = vpop.f32.mrf.mxu0
    %v375 = vadd.f32 %v326, %v374
    %v376 = vpop.f32.mrf.mxu0
    %v377 = vadd.f32 %v328, %v376
    %378 = vmatmul.bf16.gmra.mxu0 %v188
    %v379 = vpop.f32.mrf.mxu0
    %v380 = vadd.f32 %v331, %v379
    %v381 = vpop.f32.mrf.mxu0
    %v382 = vadd.f32 %v333, %v381
    %383 = vmatmul.bf16.gmra.mxu0 %v190
    %v384 = vpop.f32.mrf.mxu0
    %v385 = vadd.f32 %v336, %v384
    %v386 = vpop.f32.mrf.mxu0
    %v387 = vadd.f32 %v338, %v386
    %388 = vmatmul.bf16.gmra.mxu0 %v192
    %v389 = vpop.f32.mrf.mxu0
    %v390 = vadd.f32 %v341, %v389
    %v391 = vpop.f32.mrf.mxu0
    %v392 = vadd.f32 %v343, %v391
    %393 = vmatmul.bf16.gmra.mxu0 %v194
    %v394 = vpop.f32.mrf.mxu0
    %v395 = vadd.f32 %v346, %v394
    %v396 = vpop.f32.mrf.mxu0
    %v397 = vadd.f32 %v348, %v396
    %398 = vmatmul.bf16.gmra.mxu0 %v196
    %v399 = vpop.f32.mrf.mxu0
    %v400 = vadd.f32 %v351, %v399
    %v401 = vpop.f32.mrf.mxu0
    %v402 = vadd.f32 %v353, %v401
    %403 = vmatmul.bf16.gmra.mxu0 %v198
    %v404 = vpop.f32.mrf.mxu0
    %v405 = vadd.f32 %v356, %v404
    %v406 = vpop.f32.mrf.mxu0
    %v407 = vadd.f32 %v358, %v406
    %408 = vdwg.mxu0
    %v409 = vadd.f32 %v71, %v370
    %v410 = vadd.f32 %v72, %v372
    %v411 = vadd.f32 %v73, %v375
    %v412 = vadd.f32 %v74, %v377
    %v413 = vadd.f32 %v75, %v380
    %v414 = vadd.f32 %v76, %v382
    %v415 = vadd.f32 %v77, %v385
    %v416 = vadd.f32 %v78, %v387
    %v417 = vadd.f32 %v79, %v390
    %v418 = vadd.f32 %v80, %v392
    %v419 = vadd.f32 %v81, %v395
    %v420 = vadd.f32 %v82, %v397
    %v421 = vadd.f32 %v83, %v400
    %v422 = vadd.f32 %v84, %v402
    %v423 = vadd.f32 %v85, %v405
    %v424 = vadd.f32 %v86, %v407
    %425 = vst [vmem:[#allocation2] sm:$0xff] %v409
    %426 = vst [vmem:[#allocation2 + $0x8] sm:$0xff] %v410
    %427 = vst [vmem:[#allocation2 + $0x10] sm:$0xff] %v411
    %428 = vst [vmem:[#allocation2 + $0x18] sm:$0xff] %v412
    %429 = vst [vmem:[#allocation2 + $0x20] sm:$0xff] %v413
    %430 = vst [vmem:[#allocation2 + $0x28] sm:$0xff] %v414
    %431 = vst [vmem:[#allocation2 + $0x30] sm:$0xff] %v415
    %432 = vst [vmem:[#allocation2 + $0x38] sm:$0xff] %v416
    %433 = vst [vmem:[#allocation2 + $0x40] sm:$0xff] %v417
    %434 = vst [vmem:[#allocation2 + $0x48] sm:$0xff] %v418
    %435 = vst [vmem:[#allocation2 + $0x50] sm:$0xff] %v419
    %436 = vst [vmem:[#allocation2 + $0x58] sm:$0xff] %v420
    %437 = vst [vmem:[#allocation2 + $0x60] sm:$0xff] %v421
    %438 = vst [vmem:[#allocation2 + $0x68] sm:$0xff] %v422
    %439 = vst [vmem:[#allocation2 + $0x70] sm:$0xff] %v423
    %440 = vst [vmem:[#allocation2 + $0x78] sm:$0xff] %v424
    // Predicated region
    $region26: #{tpu_custom_call.1} parent=1 // pred_check
      %p441 = pneg %p47
    $region27: #{tpu_custom_call.1} parent=1 // pred_check_branch
      %443 = sbr.rel (%p441) target = $region29
    $region28: #{tpu_custom_call.1} parent=1 // pred_region
      %v444 = vld [vmem:[#allocation2] sm:$0xff]
      %v445 = vld [vmem:[#allocation2 + $0x8] sm:$0xff]
      %v446 = vld [vmem:[#allocation2 + $0x10] sm:$0xff]
      %v447 = vld [vmem:[#allocation2 + $0x18] sm:$0xff]
      %v448 = vld [vmem:[#allocation2 + $0x20] sm:$0xff]
      %v449 = vld [vmem:[#allocation2 + $0x28] sm:$0xff]
      %v450 = vld [vmem:[#allocation2 + $0x30] sm:$0xff]
      %v451 = vld [vmem:[#allocation2 + $0x38] sm:$0xff]
      %v452 = vld [vmem:[#allocation2 + $0x40] sm:$0xff]
      %v453 = vld [vmem:[#allocation2 + $0x48] sm:$0xff]
      %v454 = vld [vmem:[#allocation2 + $0x50] sm:$0xff]
      %v455 = vld [vmem:[#allocation2 + $0x58] sm:$0xff]
      %v456 = vld [vmem:[#allocation2 + $0x60] sm:$0xff]
      %v457 = vld [vmem:[#allocation2 + $0x68] sm:$0xff]
      %v458 = vld [vmem:[#allocation2 + $0x70] sm:$0xff]
      %v459 = vld [vmem:[#allocation2 + $0x78] sm:$0xff]
      %v460 = vmax.f32 %v444, 0.0
      %v461 = vmax.f32 %v445, 0.0
      %v462 = vmax.f32 %v446, 0.0
      %v463 = vmax.f32 %v447, 0.0
      %v464 = vmax.f32 %v448, 0.0
      %v465 = vmax.f32 %v449, 0.0
      %v466 = vmax.f32 %v450, 0.0
      %v467 = vmax.f32 %v451, 0.0
      %v468 = vmax.f32 %v452, 0.0
      %v469 = vmax.f32 %v453, 0.0
      %v470 = vmax.f32 %v454, 0.0
      %v471 = vmax.f32 %v455, 0.0
      %v472 = vmax.f32 %v456, 0.0
      %v473 = vmax.f32 %v457, 0.0
      %v474 = vmax.f32 %v458, 0.0
      %v475 = vmax.f32 %v459, 0.0
      %476 = vst [vmem:[#allocation8] sm:$0xff] %v460
      %477 = vst [vmem:[#allocation8 + $0x8] sm:$0xff] %v461
      %478 = vst [vmem:[#allocation8 + $0x10] sm:$0xff] %v462
      %479 = vst [vmem:[#allocation8 + $0x18] sm:$0xff] %v463
      %480 = vst [vmem:[#allocation8 + $0x20] sm:$0xff] %v464
      %481 = vst [vmem:[#allocation8 + $0x28] sm:$0xff] %v465
      %482 = vst [vmem:[#allocation8 + $0x30] sm:$0xff] %v466
      %483 = vst [vmem:[#allocation8 + $0x38] sm:$0xff] %v467
      %484 = vst [vmem:[#allocation8 + $0x40] sm:$0xff] %v468
      %485 = vst [vmem:[#allocation8 + $0x48] sm:$0xff] %v469
      %486 = vst [vmem:[#allocation8 + $0x50] sm:$0xff] %v470
      %487 = vst [vmem:[#allocation8 + $0x58] sm:$0xff] %v471
      %488 = vst [vmem:[#allocation8 + $0x60] sm:$0xff] %v472
      %489 = vst [vmem:[#allocation8 + $0x68] sm:$0xff] %v473
      %490 = vst [vmem:[#allocation8 + $0x70] sm:$0xff] %v474
      %491 = vst [vmem:[#allocation8 + $0x78] sm:$0xff] %v475
    $region29: #{tpu_custom_call.1} parent=1 // pred_fallthru
      _
    // Predicated region
    $region30: #{tpu_custom_call.1} parent=1 // pred_check
      _
    $region31: #{tpu_custom_call.1} parent=1 // pred_check_branch
      %493 = sbr.rel (0) target = $region33
    $region32: #{tpu_custom_call.1} parent=1 // pred_region
      %495 = vsyncadd [#allocation5], 0
      %s496 = sshll.u32 [#allocation8], 4
      %s497 = int_to_ptr.vmem [resolvable:$true] %s496
      %s498 = sshll.u32 %s3, 4
      %s499 = int_to_ptr.hbm [resolvable:$true] %s498
      %504 = dma.vmem_to_hbm [thread:$0]  %s497, 2048, %s499, [#allocation5], 128, 128, 8
    $region33: #{tpu_custom_call.1} parent=1 // pred_fallthru
      _
    // Predicated region
    $region34: #{tpu_custom_call.1} parent=1 // pred_check
      _
    $region35: #{tpu_custom_call.1} parent=1 // pred_check_branch
      %506 = sbr.rel (0) target = $region37
    $region36: #{tpu_custom_call.1} parent=1 // pred_region
      %508 = dma.done [#allocation5], 2048
    $region37: #{tpu_custom_call.1} parent=1 // pred_fallthru
      _
    %509 = vsyncpa [#allocation4], 1
    %510 = vsyncpa [#allocation7], 1
    %511 = vsyncpa [#allocation5], 1

</llo_original>
